<compile_context>
chip_gen: v5e
topology: v5e:2x2
jax: 0.10.0
libtpu: 0.0.40
codegen_flags: <defaults>
</compile_context>

<pallas_src>
import math
from functools import partial

import jax
import jax.numpy as jnp
from jax import lax
from jax.experimental import pallas as pl
from jax.experimental.pallas import tpu as pltpu


# ----------------------------- tiled GEMM (Linear) -----------------------------

def _matmul_kernel(x_ref, w_ref, o_ref, acc_ref):
    """One (tm, tn) output tile; K is the innermost ('arbitrary') grid axis.
    x block: (tm, tk); w block: (tn, tk) (torch Linear layout, contracted on the
    last dim of both operands)."""
    @pl.when(pl.program_id(2) == 0)
    def _init():
        acc_ref[...] = jnp.zeros_like(acc_ref)

    acc_ref[...] += lax.dot_general(
        x_ref[...], w_ref[...],
        dimension_numbers=(((1,), (1,)), ((), ())),
        preferred_element_type=jnp.float32,
    )

    @pl.when(pl.program_id(2) == pl.num_programs(2) - 1)
    def _store():
        o_ref[...] = acc_ref[...].astype(o_ref.dtype)


def linear(x, w, *, tm=256, tn=256, tk=512):
    """x: (M, K); w: (N, K) torch Linear convention. Returns x @ w.T (tiled)."""
    M, K = x.shape
    N = w.shape[0]
    tm, tn, tk = min(tm, M), min(tn, N), min(tk, K)
    # TODO(synk): remainder masking when M/N/K are not multiples of the tiles
    # (real model dims divide 256/512; the demo fits in a single tile).
    grid = (pl.cdiv(M, tm), pl.cdiv(N, tn), pl.cdiv(K, tk))
    return pl.pallas_call(
        _matmul_kernel,
        out_shape=jax.ShapeDtypeStruct((M, N), x.dtype),
        grid_spec=pltpu.PrefetchScalarGridSpec(
            num_scalar_prefetch=0,
            grid=grid,
            in_specs=[
                pl.BlockSpec((tm, tk), lambda i, j, k: (i, k)),
                pl.BlockSpec((tn, tk), lambda i, j, k: (j, k)),
            ],
            out_specs=pl.BlockSpec((tm, tn), lambda i, j, k: (i, j)),
            scratch_shapes=[pltpu.VMEM((tm, tn), jnp.float32)],
        ),
        compiler_params=pltpu.CompilerParams(
            dimension_semantics=("parallel", "parallel", "arbitrary")),
    )(x, w)


# --------------- fused RoPE + q/k/v slab split (one HBM pass, no transposes) ---------------

def _rope_split_kernel(cos_ref, sin_ref, qkv_ref, qo_ref, ko_ref, vo_ref):
    """qkv block: (1, ts, Ntot) with columns laid out [q heads | k heads | v heads].
    Rotation out = x*cos + swap_pairs(x)*sin where sin carries the +/- sign per lane
    and the v columns have cos=1, sin=0 (identity).  Outputs are lane-dense slabs
    q:(1,ts,H*D) k/v:(1,ts,Hkv*D) -- no per-head masked stores."""
    x = qkv_ref[0]                       # (ts, Ntot)
    c = cos_ref[...]                     # (ts, Ntot)
    s = sin_ref[...]                     # (ts, Ntot)
    n = x.shape[1]

    lane = lax.broadcasted_iota(jnp.int32, x.shape, 1)
    even = (lane % 2) == 0
    # swap adjacent (even, odd) pairs: even lanes take their right neighbor,
    # odd lanes take their left neighbor.  XLU rolls, VPU select.
    x_swap = jnp.where(even,
                       pltpu.roll(x, n - 1, axis=1),   # == roll by -1
                       pltpu.roll(x, 1, axis=1))
    r = x * c + x_swap * s               # rotated q,k; v passes through unchanged

    nq = qo_ref.shape[2]
    nk = ko_ref.shape[2]
    qo_ref[0] = r[:, :nq].astype(qo_ref.dtype)
    ko_ref[0] = r[:, nq:nq + nk].astype(ko_ref.dtype)
    vo_ref[0] = r[:, nq + nk:].astype(vo_ref.dtype)


def _build_rope_tables(freqs_cos, freqs_sin, n_heads, n_kv_heads, head_dim):
    """Expand (S, D/2) cos/sin into lane-dense (S, Ntot) tables over the fused
    [q|k|v] feature layout.  The complex-multiply sign is folded into sin
    (-s, +s interleaved); the v region gets (cos=1, sin=0).  These are tiny
    (no batch factor) and built once per call."""
    S = freqs_cos.shape[0]
    cos_d = jnp.repeat(freqs_cos, 2, axis=-1)                                 # c0,c0,c1,c1,...
    sin_d = jnp.stack([-freqs_sin, freqs_sin], axis=-1).reshape(S, head_dim)  # -s0,+s0,-s1,+s1,...
    n_rot = n_heads + n_kv_heads
    cos_f = jnp.concatenate(
        [jnp.tile(cos_d, (1, n_rot)),
         jnp.ones((S, n_kv_heads * head_dim), cos_d.dtype)], axis=1)
    sin_f = jnp.concatenate(
        [jnp.tile(sin_d, (1, n_rot)),
         jnp.zeros((S, n_kv_heads * head_dim), sin_d.dtype)], axis=1)
    return cos_f, sin_f


def rope_split(qkv, cos_f, sin_f, n_heads, n_kv_heads, head_dim, *, ts=None):
    """qkv: (B, S, (H + 2*Hkv)*D) -> (q (B,S,H*D), k (B,S,Hkv*D), v (B,S,Hkv*D))
    with RoPE applied to q and k.  Grid (B, seq tiles)."""
    B, S, Ntot = qkv.shape
    nq = n_heads * head_dim
    nkv = n_kv_heads * head_dim
    if ts is None:
        ts = S if S <= 256 else 256
    # TODO(synk): remainder handling when S % ts != 0.
    grid = (B, S // ts)
    out_shape = (
        jax.ShapeDtypeStruct((B, S, nq), qkv.dtype),
        jax.ShapeDtypeStruct((B, S, nkv), qkv.dtype),
        jax.ShapeDtypeStruct((B, S, nkv), qkv.dtype),
    )
    return pl.pallas_call(
        _rope_split_kernel,
        out_shape=out_shape,
        grid_spec=pltpu.PrefetchScalarGridSpec(
            num_scalar_prefetch=0,
            grid=grid,
            in_specs=[
                pl.BlockSpec((ts, Ntot), lambda b, si: (si, 0)),
                pl.BlockSpec((ts, Ntot), lambda b, si: (si, 0)),
                pl.BlockSpec((1, ts, Ntot), lambda b, si: (b, si, 0)),
            ],
            out_specs=(
                pl.BlockSpec((1, ts, nq), lambda b, si: (b, si, 0)),
                pl.BlockSpec((1, ts, nkv), lambda b, si: (b, si, 0)),
                pl.BlockSpec((1, ts, nkv), lambda b, si: (b, si, 0)),
            ),
        ),
        compiler_params=pltpu.CompilerParams(
            dimension_semantics=("parallel", "arbitrary")),
    )(cos_f, sin_f, qkv)


# --------------- flash attention: all heads per grid cell, GQA reuse in-kernel ---------------

def _flash_attn_kernel(q_ref, k_ref, v_ref, o_ref, m_ref, l_ref, acc_ref, *,
                       scale, n_heads, n_kv_heads, head_dim):
    """q block (1, tq, H*D); k/v blocks (1, tkv, Hkv*D); out block (1, tq, H*D).
    Static loop over query heads; kv head = h // n_rep so each k/v tile is loaded
    from HBM once and shared by n_rep query heads.  Online-softmax state per head
    lives in VMEM scratch (m, l: (H, tq, 1); acc: (H, tq, D))."""
    kv = pl.program_id(2)
    n_rep = n_heads // n_kv_heads

    @pl.when(kv == 0)
    def _init():
        m_ref[...] = jnp.full_like(m_ref, -jnp.inf)
        l_ref[...] = jnp.zeros_like(l_ref)
        acc_ref[...] = jnp.zeros_like(acc_ref)

    q = q_ref[0]                          # (tq, H*D)
    k = k_ref[0]                          # (tkv, Hkv*D)
    v = v_ref[0]                          # (tkv, Hkv*D)

    for h in range(n_heads):
        hk = h // n_rep
        q_h = q[:, h * head_dim:(h + 1) * head_dim]        # (tq, D)
        k_h = k[:, hk * head_dim:(hk + 1) * head_dim]      # (tkv, D)
        v_h = v[:, hk * head_dim:(hk + 1) * head_dim]      # (tkv, D)

        s = lax.dot_general(
            q_h, k_h, dimension_numbers=(((1,), (1,)), ((), ())),
            preferred_element_type=jnp.float32) * scale    # (tq, tkv)

        m_prev = m_ref[h]
        m_new = jnp.maximum(m_prev, s.max(axis=-1, keepdims=True))
        alpha = jnp.exp(m_prev - m_new)
        p = jnp.exp(s - m_new)
        l_ref[h] = alpha * l_ref[h] + p.sum(axis=-1, keepdims=True)
        acc_ref[h] = alpha * acc_ref[h] + jnp.dot(
            p.astype(v_h.dtype), v_h, preferred_element_type=jnp.float32)
        m_ref[h] = m_new

    @pl.when(kv == pl.num_programs(2) - 1)
    def _finalize():
        parts = []
        for h in range(n_heads):
            inv_l = pl.reciprocal(l_ref[h], approx=True)
            parts.append((acc_ref[h] * inv_l).astype(o_ref.dtype))
        # single lane-dense (tq, H*D) store -> unmasked vst + full-slab HBM DMA
        o_ref[0] = jnp.concatenate(parts, axis=-1)


def attention(q, k, v, scale, n_heads, n_kv_heads, head_dim, *, tq=None, tkv=None):
    """q: (B, Sq, H*D); k/v: (B, Skv, Hkv*D) with Hkv | H (GQA).
    Returns (B, Sq, H*D) -- already in the layout the output projection needs."""
    B, Sq, _ = q.shape
    Skv = k.shape[1]
    if tq is None:
        tq = Sq if Sq <= 256 else 256
    if tkv is None:
        tkv = Skv if Skv <= 512 else 512
    # TODO(synk): remainder masking when Sq % tq != 0 or Skv % tkv != 0.
    grid = (B, Sq // tq, Skv // tkv)
    nq = n_heads * head_dim
    nkv = n_kv_heads * head_dim
    return pl.pallas_call(
        partial(_flash_attn_kernel, scale=scale, n_heads=n_heads,
                n_kv_heads=n_kv_heads, head_dim=head_dim),
        out_shape=jax.ShapeDtypeStruct((B, Sq, nq), q.dtype),
        grid_spec=pltpu.PrefetchScalarGridSpec(
            num_scalar_prefetch=0,
            grid=grid,
            in_specs=[
                pl.BlockSpec((1, tq, nq), lambda b, qi, kv: (b, qi, 0)),
                pl.BlockSpec((1, tkv, nkv), lambda b, qi, kv: (b, kv, 0)),
                pl.BlockSpec((1, tkv, nkv), lambda b, qi, kv: (b, kv, 0)),
            ],
            out_specs=pl.BlockSpec((1, tq, nq), lambda b, qi, kv: (b, qi, 0)),
            scratch_shapes=[
                pltpu.VMEM((n_heads, tq, 1), jnp.float32),          # running max
                pltpu.VMEM((n_heads, tq, 1), jnp.float32),          # running sum
                pltpu.VMEM((n_heads, tq, head_dim), jnp.float32),   # output accumulator
            ],
        ),
        compiler_params=pltpu.CompilerParams(
            dimension_semantics=("parallel", "parallel", "arbitrary")),
    )(q, k, v)


# ------------------------------- module forward -------------------------------

def self_attention_forward(params, x, start_pos, freqs_cos, freqs_sin, mode,
                           n_heads, n_kv_heads, cache_k=None, cache_v=None):
    """Matches torch SelfAttention.forward (no causal mask in the original module).
    cache layout here: (max_batch, max_seq, n_kv_heads*head_dim)."""
    B, S, dim = x.shape
    head_dim = dim // n_heads
    scale = 1.0 / math.sqrt(head_dim)

    # --- fused QKV projection: one tiled GEMM, weights kept (out, in); no w.T ---
    w_qkv = params.get("wqkv")
    if w_qkv is None:   # fallback; normally concatenated once at parameter-setup time
        w_qkv = jnp.concatenate([params["wq"], params["wk"], params["wv"]], axis=0)
    x2d = x.reshape(B * S, dim)
    qkv = linear(x2d, w_qkv).reshape(B, S, -1)      # (B, S, (H + 2*Hkv)*Dh)

    # --- fused RoPE + q/k/v slab split, one pass, no transposes ---
    cos_f, sin_f = _build_rope_tables(freqs_cos, freqs_sin, n_heads, n_kv_heads, head_dim)
    xq, xk, xv = rope_split(qkv, cos_f, sin_f, n_heads, n_kv_heads, head_dim)

    if mode != "train":
        # Functional KV-cache update (torch mutates self.cache in place).
        # TODO(synk): use input_output_aliases on a Pallas writeback kernel so the
        # cache is updated in place instead of copied through HBM each step.
        cache_k = cache_k.at[:B, start_pos:start_pos + S, :].set(xk)
        cache_v = cache_v.at[:B, start_pos:start_pos + S, :].set(xv)
        keys = cache_k[:B, :start_pos + S, :]
        values = cache_v[:B, :start_pos + S, :]
    else:
        keys, values = xk, xv

    # --- flash attention; GQA sharing handled inside the kernel (no repeat_kv) ---
    out2d = attention(xq, keys, values, scale, n_heads, n_kv_heads, head_dim)
    out2d = out2d.reshape(B * S, n_heads * head_dim)       # free reshape, no transpose
    out = linear(out2d, params["wo"]).reshape(B, S, dim)
    return out, cache_k, cache_v


# ---------------------------------- reference ----------------------------------

def reference_forward(params, x, freqs_cos, freqs_sin, n_heads, n_kv_heads):
    """Pure-jnp reference matching the PyTorch forward in 'train' mode."""
    B, S, dim = x.shape
    head_dim = dim // n_heads
    n_rep = n_heads // n_kv_heads

    def rot(t):
        Bq, Sq, H, D = t.shape
        tr = t.reshape(Bq, Sq, H, D // 2, 2)
        e, o = tr[..., 0], tr[..., 1]
        c = freqs_cos[None, :, None, :]
        s = freqs_sin[None, :, None, :]
        return jnp.stack([e * c - o * s, e * s + o * c], axis=-1).reshape(Bq, Sq, H, D)

    xq = (x @ params["wq"].T).reshape(B, S, n_heads, head_dim)
    xk = (x @ params["wk"].T).reshape(B, S, n_kv_heads, head_dim)
    xv = (x @ params["wv"].T).reshape(B, S, n_kv_heads, head_dim)
    xq, xk = rot(xq), rot(xk)

    keys = jnp.broadcast_to(
        xk[:, :, :, None, :], (B, S, n_kv_heads, n_rep, head_dim)
    ).reshape(B, S, n_heads, head_dim)
    values = jnp.broadcast_to(
        xv[:, :, :, None, :], (B, S, n_kv_heads, n_rep, head_dim)
    ).reshape(B, S, n_heads, head_dim)

    q = xq.transpose(0, 2, 1, 3)
    k = keys.transpose(0, 2, 1, 3)
    v = values.transpose(0, 2, 1, 3)
    scores = jnp.einsum("bhqd,bhkd->bhqk", q, k) / math.sqrt(head_dim)
    p = jax.nn.softmax(scores, axis=-1)
    o = jnp.einsum("bhqk,bhkd->bhqd", p, v)
    o = o.transpose(0, 2, 1, 3).reshape(B, S, n_heads * head_dim)
    return o @ params["wo"].T


# ------------------------------------ main --------------------------------------

if __name__ == "__main__":
    dim = 32
    n_heads = 4
    n_kv_heads = 2
    head_dim = dim // n_heads
    B, S = 2, 8
    max_seq = 16

    key = jax.random.PRNGKey(0)
    kx, kq, kk, kv, ko = jax.random.split(key, 5)
    x = jax.random.normal(kx, (B, S, dim), dtype=jnp.float32)
    params = {
        "wq": 0.05 * jax.random.normal(kq, (n_heads * head_dim, dim), dtype=jnp.float32),
        "wk": 0.05 * jax.random.normal(kk, (n_kv_heads * head_dim, dim), dtype=jnp.float32),
        "wv": 0.05 * jax.random.normal(kv, (n_kv_heads * head_dim, dim), dtype=jnp.float32),
        "wo": 0.05 * jax.random.normal(ko, (dim, n_heads * head_dim), dtype=jnp.float32),
    }
    # Fuse the q/k/v projection weights once, at parameter-setup time.
    params["wqkv"] = jnp.concatenate([params["wq"], params["wk"], params["wv"]], axis=0)

    # RoPE frequencies (freqs_complex = cos + i*sin), shape (S, head_dim//2)
    inv_freq = 1.0 / (10000.0 ** (jnp.arange(0, head_dim, 2, dtype=jnp.float32) / head_dim))
    angles = jnp.arange(S, dtype=jnp.float32)[:, None] * inv_freq[None, :]
    freqs_cos = jnp.cos(angles)
    freqs_sin = jnp.sin(angles)

    # --- train mode ---
    out, _, _ = self_attention_forward(
        params, x, 0, freqs_cos, freqs_sin, "train", n_heads, n_kv_heads)
    out = jax.block_until_ready(out)

    ref = reference_forward(params, x, freqs_cos, freqs_sin, n_heads, n_kv_heads)
    ref = jax.block_until_ready(ref)

    assert out.shape == (B, S, dim)
    err = float(jnp.max(jnp.abs(out - ref)))
    assert jnp.allclose(out, ref, atol=2e-3, rtol=2e-3), f"train max abs err {err}"

    # --- decode mode (start_pos=0 with empty cache must reproduce the train result) ---
    cache_k = jnp.zeros((B, max_seq, n_kv_heads * head_dim), jnp.float32)
    cache_v = jnp.zeros((B, max_seq, n_kv_heads * head_dim), jnp.float32)
    out_dec, cache_k, cache_v = self_attention_forward(
        params, x, 0, freqs_cos, freqs_sin, "decode", n_heads, n_kv_heads,
        cache_k, cache_v)
    out_dec = jax.block_until_ready(out_dec)
    err_d = float(jnp.max(jnp.abs(out_dec - ref)))
    assert jnp.allclose(out_dec, ref, atol=2e-3, rtol=2e-3), f"decode max abs err {err_d}"

    print("KERNEL_OK")
</pallas_src>

<mosaic_0001>
module attributes {stable_mosaic.version = 11 : i64} {
  func.func @_matmul_kernel(%arg0: i32, %arg1: i32, %arg2: i32, %arg3: memref<16x32xf32, #tpu.memory_space<vmem>>, %arg4: memref<64x32xf32, #tpu.memory_space<vmem>>, %arg5: memref<16x64xf32, #tpu.memory_space<vmem>>, %arg6: memref<16x64xf32, #tpu.memory_space<vmem>>) attributes {dimension_semantics = [#tpu.dimension_semantics<parallel>, #tpu.dimension_semantics<parallel>, #tpu.dimension_semantics<arbitrary>], iteration_bounds = array<i64: 1, 1, 1>, scalar_prefetch = 0 : i64, scratch_operands = 1 : i64, tpu.core_type = #tpu.core_type<tc>, window_params = [{transform_indices = @transform_0, window_bounds = array<i64: 16, 32>}, {transform_indices = @transform_1, window_bounds = array<i64: 64, 32>}, {transform_indices = @transform_2, window_bounds = array<i64: 16, 64>}]} {
    %c0_i32 = arith.constant 0 : i32
    %0 = arith.cmpi eq, %arg2, %c0_i32 : i32
    %1 = arith.extui %0 : i1 to i32
    %c0_i32_0 = arith.constant 0 : i32
    %2 = arith.cmpi ne, %1, %c0_i32_0 : i32
    scf.if %2 {
      %cst_10 = arith.constant 0.000000e+00 : f32
      %12 = vector.broadcast %cst_10 : f32 to vector<16x64xf32>
      %c0_11 = arith.constant 0 : index
      %c0_12 = arith.constant 0 : index
      %13 = vector.load %arg6[%c0_11, %c0_12] : memref<16x64xf32, #tpu.memory_space<vmem>>, vector<16x64xf32>
      tpu.vector_store %arg6[%c0_11, %c0_12], %12 {strides = array<i32>} : memref<16x64xf32, #tpu.memory_space<vmem>>, vector<16x64xf32>,
    } else {
    }
    %c0 = arith.constant 0 : index
    %c0_1 = arith.constant 0 : index
    %3 = vector.load %arg6[%c0, %c0_1] : memref<16x64xf32, #tpu.memory_space<vmem>>, vector<16x64xf32>
    %c0_2 = arith.constant 0 : index
    %c0_3 = arith.constant 0 : index
    %4 = vector.load %arg3[%c0_2, %c0_3] : memref<16x32xf32, #tpu.memory_space<vmem>>, vector<16x32xf32>
    %c0_4 = arith.constant 0 : index
    %c0_5 = arith.constant 0 : index
    %5 = vector.load %arg4[%c0_4, %c0_5] : memref<64x32xf32, #tpu.memory_space<vmem>>, vector<64x32xf32>
    %cst = arith.constant dense<0.000000e+00> : vector<16x64xf32>
    %6 = tpu.matmul %4, %5, %cst {dimension_numbers = #tpu.dot_dimension_numbers<[1], [1], [0], [0], [0, 0, 1, 0], [], []>} : vector<16x32xf32>, vector<64x32xf32>, vector<16x64xf32> -> vector<16x64xf32>
    %7 = arith.addf %3, %6 : vector<16x64xf32>
    %c0_6 = arith.constant 0 : index
    %c0_7 = arith.constant 0 : index
    %8 = vector.load %arg6[%c0_6, %c0_7] : memref<16x64xf32, #tpu.memory_space<vmem>>, vector<16x64xf32>
    tpu.vector_store %arg6[%c0_6, %c0_7], %7 {strides = array<i32>} : memref<16x64xf32, #tpu.memory_space<vmem>>, vector<16x64xf32>,
    %c0_i32_8 = arith.constant 0 : i32
    %9 = arith.cmpi eq, %arg2, %c0_i32_8 : i32
    %10 = arith.extui %9 : i1 to i32
    %c0_i32_9 = arith.constant 0 : i32
    %11 = arith.cmpi ne, %10, %c0_i32_9 : i32
    scf.if %11 {
      %c0_10 = arith.constant 0 : index
      %c0_11 = arith.constant 0 : index
      %12 = vector.load %arg6[%c0_10, %c0_11] : memref<16x64xf32, #tpu.memory_space<vmem>>, vector<16x64xf32>
      %c0_12 = arith.constant 0 : index
      %c0_13 = arith.constant 0 : index
      %13 = vector.load %arg5[%c0_12, %c0_13] : memref<16x64xf32, #tpu.memory_space<vmem>>, vector<16x64xf32>
      tpu.vector_store %arg5[%c0_12, %c0_13], %12 {strides = array<i32>} : memref<16x64xf32, #tpu.memory_space<vmem>>, vector<16x64xf32>,
    } else {
    }
    return
  }
  func.func @transform_0(%arg0: i32, %arg1: i32, %arg2: i32) -> (i32, i32) {
    %c0_i32 = arith.constant 0 : i32
    return %arg0, %arg2 : i32, i32
  }
  func.func @transform_1(%arg0: i32, %arg1: i32, %arg2: i32) -> (i32, i32) {
    %c0_i32 = arith.constant 0 : i32
    return %arg1, %arg2 : i32, i32
  }
  func.func @transform_2(%arg0: i32, %arg1: i32, %arg2: i32) -> (i32, i32) {
    %c0_i32 = arith.constant 0 : i32
    return %arg0, %arg1 : i32, i32
  }
}

</mosaic_0001>

<llo_original>
// kernel: tpu_custom_call.1
$region0: #{tpu_custom_call.1}
  #allocation0 [shape = 'u32[]', space=smem, size = 0x4, offset = 0x4, fixed_abs, tag = 'smem constant byte address 0x4 - core index']
  #allocation1 [shape = 'u32[72,128]{1,0:T(1,128)}', space=vmem, size = 0x9000, scoped, tag = 'internal scratch']
  #allocation2 [shape = 'f32[16,64]{1,0:T(8,128)}', space=vmem, size = 0x2000, scoped, tag = 'scratch operand']
  %s0 = inlined_call_operand.vmem [shape: f32[16,32], index: 0, kind: input, shape index: {}]
  %s1 = inlined_call_operand.vmem [shape: f32[64,32], index: 1, kind: input, shape index: {}]
  %s2 = inlined_call_operand.hbm [shape: f32[16,64], index: 2, kind: output, shape index: {}]
  %s3 = sld [smem:[#allocation0]]
  $region26: #{tpu_custom_call.1} parent=0
    _
  %s5 = ssub.s32 1, %s3
  %s6 = scalar_select 0, %s5, %s3
  $region1: #{tpu_custom_call.1} parent=0
    #allocation3 [shape = 'u8[8192]{0}', space=vmem, size = 0x2000, scoped, tag = 'output window, operand 0, single buffered']
    #allocation4 [shape = 's32[1]{0}', space=sflag, size = 0x4, scoped, tag = 'scoped memory for tpu_custom_call.1']
    %7 = vsyncpa [#allocation4], 0
    // Predicated region
    $region2: #{tpu_custom_call.1} parent=1 // pred_check
      _
    $region3: #{tpu_custom_call.1} parent=1 // pred_check_branch
      %9 = sbr.rel (0) target = $region5
    $region4: #{tpu_custom_call.1} parent=1 // pred_region
      _
    $region5: #{tpu_custom_call.1} parent=1 // pred_fallthru
      _
    // Predicated region
    $region6: #{tpu_custom_call.1} parent=1 // pred_check
      _
    $region7: #{tpu_custom_call.1} parent=1 // pred_check_branch
      %11 = sbr.rel (0) target = $region9
    $region8: #{tpu_custom_call.1} parent=1 // pred_region
      _
    $region9: #{tpu_custom_call.1} parent=1 // pred_fallthru
      _
    %p12 = scmp.eq.s32.totalorder 0, 0
    // Predicated region
    $region10: #{tpu_custom_call.1} parent=1 // pred_check
      %p13 = pneg %p12
    $region11: #{tpu_custom_call.1} parent=1 // pred_check_branch
      %15 = sbr.rel (%p13) target = $region13
    $region12: #{tpu_custom_call.1} parent=1 // pred_region
      %vm16 = vcmask 523264
      %17 = vst.msk [vmem:[#allocation2] sm:$0xff] %vm16, 0.0
      %18 = vst.msk [vmem:[#allocation2 + $0x8] sm:$0xff] %vm16, 0.0
    $region13: #{tpu_custom_call.1} parent=1 // pred_fallthru
      _
    %v19 = vld [vmem:[#allocation2] sm:$0xff]
    %v20 = vld [vmem:[#allocation2 + $0x8] sm:$0xff]
    %v21 = vld [vmem:[%s0] sm:$0xff]
    %v22 = vld [vmem:[%s0 + $0x8] sm:$0xff]
    %v23 = vld [vmem:[%s1] sm:$0xff]
    %v24 = vld [vmem:[%s1 + $0x8] sm:$0xff]
    %v25 = vld [vmem:[%s1 + $0x10] sm:$0xff]
    %v26 = vld [vmem:[%s1 + $0x18] sm:$0xff]
    %v27 = vld [vmem:[%s1 + $0x20] sm:$0xff]
    %v28 = vld [vmem:[%s1 + $0x28] sm:$0xff]
    %v29 = vld [vmem:[%s1 + $0x30] sm:$0xff]
    %v30 = vld [vmem:[%s1 + $0x38] sm:$0xff]
    %vm31 = vcmask 261120
    %v33 = vsel %vm31, %v21, 0
    %v36 = vsel %vm31, %v22, 0
    %v39 = vsel %vm31, %v23, 0
    %v42 = vsel %vm31, %v24, 0
    %v45 = vsel %vm31, %v25, 0
    %v48 = vsel %vm31, %v26, 0
    %v51 = vsel %vm31, %v27, 0
    %v54 = vsel %vm31, %v28, 0
    %v57 = vsel %vm31, %v29, 0
    %v60 = vsel %vm31, %v30, 0
    %62 = vmatpush.xpose.msra.mxu0 0.0
    %63 = vmatpush.xpose.msra.mxu0 0.0
    %64 = vmatpush.xpose.msra.mxu0 0.0
    %65 = vmatpush.xpose.msra.mxu0 0.0
    %66 = vmatpush.xpose.msra.mxu0 0.0
    %67 = vmatpush.xpose.msra.mxu0 0.0
    %68 = vmatpush.xpose.msra.mxu0 0.0
    %69 = vmatpush.xpose.msra.mxu0 0.0
    %70 = vmatpush.xpose.msra.mxu0 %v60
    %71 = vmatpush.xpose.msra.mxu0 %v57
    %72 = vmatpush.xpose.msra.mxu0 %v54
    %73 = vmatpush.xpose.msra.mxu0 %v51
    %74 = vmatpush.xpose.msra.mxu0 %v48
    %75 = vmatpush.xpose.msra.mxu0 %v45
    %76 = vmatpush.xpose.msra.mxu0 %v42
    %77 = vmatpush.xpose.msra.mxu0 %v39
    %78 = vmatmul.f32.gmra.mxu0 %v33
    %v79 = vpop.f32.mrf.mxu0
    %v80 = vadd.f32 0.0, %v79
    %81 = vmatmul.f32.gmra.mxu0 %v36
    %v82 = vpop.f32.mrf.mxu0
    %v83 = vadd.f32 0.0, %v82
    %84 = vdwg.mxu0
    %v85 = vadd.f32 %v19, %v80
    %v86 = vadd.f32 %v20, %v83
    %vm87 = vcmask 523264
    %88 = vst.msk [vmem:[#allocation2] sm:$0xff] %vm87, %v85
    %89 = vst.msk [vmem:[#allocation2 + $0x8] sm:$0xff] %vm87, %v86
    // Predicated region
    $region14: #{tpu_custom_call.1} parent=1 // pred_check
      %p90 = pneg %p12
    $region15: #{tpu_custom_call.1} parent=1 // pred_check_branch
      %92 = sbr.rel (%p90) target = $region17
    $region16: #{tpu_custom_call.1} parent=1 // pred_region
      %v93 = vld [vmem:[#allocation2] sm:$0xff]
      %v94 = vld [vmem:[#allocation2 + $0x8] sm:$0xff]
      %95 = vst.msk [vmem:[#allocation3] sm:$0xff] %vm87, %v93
      %96 = vst.msk [vmem:[#allocation3 + $0x8] sm:$0xff] %vm87, %v94
    $region17: #{tpu_custom_call.1} parent=1 // pred_fallthru
      _
    // Predicated region
    $region18: #{tpu_custom_call.1} parent=1 // pred_check
      _
    $region19: #{tpu_custom_call.1} parent=1 // pred_check_branch
      %98 = sbr.rel (0) target = $region21
    $region20: #{tpu_custom_call.1} parent=1 // pred_region
      %100 = vsyncadd [#allocation4], 0
      %s101 = sshll.u32 [#allocation3], 4
      %s102 = int_to_ptr.vmem [resolvable:$true] %s101
      %s103 = sshll.u32 %s2, 4
      %s104 = int_to_ptr.hbm [resolvable:$true] %s103
      %109 = dma.vmem_to_hbm [thread:$0]  %s102, 256, %s104, [#allocation4], 128, 128, 8
    $region21: #{tpu_custom_call.1} parent=1 // pred_fallthru
      _
    // Predicated region
    $region22: #{tpu_custom_call.1} parent=1 // pred_check
      _
    $region23: #{tpu_custom_call.1} parent=1 // pred_check_branch
      %111 = sbr.rel (0) target = $region25
    $region24: #{tpu_custom_call.1} parent=1 // pred_region
      %113 = dma.done [#allocation4], 256
    $region25: #{tpu_custom_call.1} parent=1 // pred_fallthru
      _
    %114 = vsyncpa [#allocation4], 1

</llo_original>
